<compile_context>
chip_gen: v6e
topology: v6e:2x2x1
jax: 0.10.0
libtpu: 0.0.40
codegen_flags: <defaults>
</compile_context>

<pallas_src>
import jax
import jax.numpy as jnp
from jax import lax
from jax.experimental import pallas as pl
from jax.experimental.pallas import tpu as pltpu

HIDDEN = 50          # fc1 width from the PyTorch module
HIDDEN_PAD = 128     # padded so `h` is lane-dense (pad cols are exactly 0)
OUT_LANES = 128      # packed head output width: [loc(64) | scale(64)]
HALF = OUT_LANES // 2
TILE_B_MAX = 2048    # max batch rows per grid step
MIN_TILE_B = 128     # smallest batch tile / bucket


def _softplus(x):
    # Single-branch, numerically stable softplus: one exp + one log1p on EUP.
    return jnp.maximum(x, 0.0) + jnp.log1p(jnp.exp(-jnp.abs(x)))


def _mlp_kernel(x_ref, w1_ref, b1_ref, wh_ref, bh_ref, out_ref):
    # fc1 + ReLU (MXU matmul, f32 accumulate; VPU elementwise in f32)
    h = jnp.dot(x_ref[...], w1_ref[...], preferred_element_type=jnp.float32)
    h = jnp.maximum(h + b1_ref[...], 0.0)

    # Fused distribution head: ONE matmul produces [loc | raw_scale] packed
    # into a single 128-lane slab.
    z = jnp.dot(h.astype(wh_ref.dtype), wh_ref[...],
                preferred_element_type=jnp.float32) + bh_ref[...]

    # Lanes [0,64) stay linear (loc); lanes [64,128) get softplus (scale).
    # One full unmasked (tile_b, 128) store — no concatenate temp, no masked
    # half-vreg stores.
    col = lax.broadcasted_iota(jnp.int32, z.shape, 1)
    out_ref[...] = jnp.where(col < HALF, z, _softplus(z)).astype(out_ref.dtype)


def prepare_params(params, out_features, dtype=jnp.float32):
    """One-time param prep: transpose to (in, out), fuse loc/scale heads into
    one 128-lane slab, zero-pad to lane-dense widths.  Call at init /
    checkpoint-load time, not per call.  dtype=bfloat16 targets the native
    bf16 MXU on v6e/v7x (biases / accumulation stay f32)."""
    in_features = params["w1"].shape[1]
    assert out_features <= HALF, (
        f"packed head layout needs out_features <= {HALF}, got {out_features}")

    w1_p = jnp.zeros((in_features, HIDDEN_PAD), jnp.float32)
    w1_p = w1_p.at[:, :HIDDEN].set(params["w1"].T)
    b1_p = jnp.zeros((1, HIDDEN_PAD), jnp.float32)
    b1_p = b1_p.at[:, :HIDDEN].set(params["b1"])

    w_head = jnp.zeros((HIDDEN_PAD, OUT_LANES), jnp.float32)
    w_head = w_head.at[:HIDDEN, :out_features].set(params["w_loc"].T)
    w_head = w_head.at[:HIDDEN, HALF:HALF + out_features].set(params["w_scale"].T)
    b_head = jnp.zeros((1, OUT_LANES), jnp.float32)
    b_head = b_head.at[:, :out_features].set(params["b_loc"])
    b_head = b_head.at[:, HALF:HALF + out_features].set(params["b_scale"])

    return dict(w1=w1_p.astype(dtype), b1=b1_p,
                w_head=w_head.astype(dtype), b_head=b_head,
                out_features=out_features, dtype=dtype)


def _bucket_rows(b):
    """Round batch up to a power-of-two bucket (>= MIN_TILE_B) so distinct
    batch sizes map to a small set of compiled shapes."""
    return max(MIN_TILE_B, pl.next_power_of_2(b))


def mlp_forward(x, prep):
    """x: (B, in_features) float32. prep: output of prepare_params.
    Returns (loc, scale), each (B, out_features) float32."""
    B, in_features = x.shape
    out_features = prep["out_features"]

    b_pad = _bucket_rows(B)
    # Prefer >= 2 grid steps once the batch is big enough (v7x: 2 TensorCores
    # only engage with >= 2 parallel grid iterations).
    tile_b = min(TILE_B_MAX, max(MIN_TILE_B, b_pad // 2))
    b_pad = pl.cdiv(b_pad, tile_b) * tile_b

    x = x.astype(prep["w1"].dtype)
    if b_pad != B:
        x = jnp.pad(x, ((0, b_pad - B), (0, 0)))

    const2d = lambda a: pl.BlockSpec(a.shape, lambda i: (0, 0))

    out = pl.pallas_call(
        _mlp_kernel,
        out_shape=jax.ShapeDtypeStruct((b_pad, OUT_LANES), jnp.float32),
        grid=(b_pad // tile_b,),
        in_specs=[
            pl.BlockSpec((tile_b, in_features), lambda i: (i, 0)),  # x tiles
            const2d(prep["w1"]),      # weights/biases stay VMEM-resident
            const2d(prep["b1"]),
            const2d(prep["w_head"]),
            const2d(prep["b_head"]),
        ],
        out_specs=pl.BlockSpec((tile_b, OUT_LANES), lambda i: (i, 0)),
        compiler_params=pltpu.CompilerParams(
            dimension_semantics=("parallel",),     # shards across 2 TCs on v7x
            vmem_limit_bytes=32 * 1024 * 1024),    # above v5e's 16 MiB default
    )(x, prep["w1"], prep["b1"], prep["w_head"], prep["b_head"])

    loc = out[:B, :out_features]
    scale = out[:B, HALF:HALF + out_features]
    return loc, scale


def init_params(key, in_features, out_features):
    """Deterministic synthetic init (PyTorch-style uniform fan-in bounds)."""
    ks = jax.random.split(key, 6)

    def lin(kw, kb, fan_in, fan_out):
        bound = 1.0 / jnp.sqrt(fan_in)
        w = jax.random.uniform(kw, (fan_out, fan_in), jnp.float32, -bound, bound)
        b = jax.random.uniform(kb, (fan_out,), jnp.float32, -bound, bound)
        return w, b

    w1, b1 = lin(ks[0], ks[1], in_features, HIDDEN)
    w_loc, b_loc = lin(ks[2], ks[3], HIDDEN, out_features)
    w_scale, b_scale = lin(ks[4], ks[5], HIDDEN, out_features)
    return dict(w1=w1, b1=b1, w_loc=w_loc, b_loc=b_loc,
                w_scale=w_scale, b_scale=b_scale)


def reference_forward(x, p):
    """Pure-JAX reference for correctness check (PyTorch layout)."""
    h = jnp.maximum(x @ p["w1"].T + p["b1"], 0.0)
    loc = h @ p["w_loc"].T + p["b_loc"]
    scale = jax.nn.softplus(h @ p["w_scale"].T + p["b_scale"])
    return loc, scale


if __name__ == "__main__":
    key = jax.random.PRNGKey(0)
    k_x, k_p = jax.random.split(key)

    batch, in_features, out_features = 8, 16, 4
    x = jax.random.normal(k_x, (batch, in_features), jnp.float32)
    params = init_params(k_p, in_features, out_features)
    ref_loc, ref_scale = reference_forward(x, params)

    # --- f32 path (default; tight tolerance) ---
    prep_f32 = prepare_params(params, out_features)        # one-time prep
    loc, scale = mlp_forward(x, prep_f32)
    jax.block_until_ready((loc, scale))
    assert loc.shape == (batch, out_features) and scale.shape == (batch, out_features)
    assert jnp.allclose(loc, ref_loc, atol=1e-5, rtol=1e-5)
    assert jnp.allclose(scale, ref_scale, atol=1e-5, rtol=1e-5)

    # --- bf16 weights/activations path (v6e/v7x MXU-friendly; loose tol) ---
    prep_bf16 = prepare_params(params, out_features, dtype=jnp.bfloat16)
    loc16, scale16 = mlp_forward(x, prep_bf16)
    jax.block_until_ready((loc16, scale16))
    assert jnp.allclose(loc16, ref_loc, atol=5e-2, rtol=5e-2)
    assert jnp.allclose(scale16, ref_scale, atol=5e-2, rtol=5e-2)

    print("KERNEL_OK")
</pallas_src>

<mosaic_0001>
module attributes {stable_mosaic.version = 11 : i64} {
  func.func @_mlp_kernel(%arg0: i32, %arg1: memref<128x16xf32, #tpu.memory_space<vmem>>, %arg2: memref<16x128xf32, #tpu.memory_space<vmem>>, %arg3: memref<1x128xf32, #tpu.memory_space<vmem>>, %arg4: memref<128x128xf32, #tpu.memory_space<vmem>>, %arg5: memref<1x128xf32, #tpu.memory_space<vmem>>, %arg6: memref<128x128xf32, #tpu.memory_space<vmem>>) attributes {dimension_semantics = [#tpu.dimension_semantics<parallel>], iteration_bounds = array<i64: 1>, scalar_prefetch = 0 : i64, scratch_operands = 0 : i64, tpu.core_type = #tpu.core_type<tc>, window_params = [{transform_indices = @transform_0, window_bounds = array<i64: 128, 16>}, {pipeline_mode = #tpu.pipeline_mode<synchronous>, transform_indices = @transform_1, window_bounds = array<i64: 16, 128>}, {pipeline_mode = #tpu.pipeline_mode<synchronous>, transform_indices = @transform_2, window_bounds = array<i64: 1, 128>}, {pipeline_mode = #tpu.pipeline_mode<synchronous>, transform_indices = @transform_3, window_bounds = array<i64: 128, 128>}, {pipeline_mode = #tpu.pipeline_mode<synchronous>, transform_indices = @transform_4, window_bounds = array<i64: 1, 128>}, {transform_indices = @transform_5, window_bounds = array<i64: 128, 128>}]} {
    %c0 = arith.constant 0 : index
    %c0_0 = arith.constant 0 : index
    %0 = vector.load %arg1[%c0, %c0_0] : memref<128x16xf32, #tpu.memory_space<vmem>>, vector<128x16xf32>
    %c0_1 = arith.constant 0 : index
    %c0_2 = arith.constant 0 : index
    %1 = vector.load %arg2[%c0_1, %c0_2] : memref<16x128xf32, #tpu.memory_space<vmem>>, vector<16x128xf32>
    %cst = arith.constant dense<0.000000e+00> : vector<128x128xf32>
    %2 = tpu.matmul %0, %1, %cst {dimension_numbers = #tpu.dot_dimension_numbers<[1], [0], [0], [1], [0, 0, 1, 1], [], []>} : vector<128x16xf32>, vector<16x128xf32>, vector<128x128xf32> -> vector<128x128xf32>
    %c0_3 = arith.constant 0 : index
    %c0_4 = arith.constant 0 : index
    %3 = vector.load %arg3[%c0_3, %c0_4] : memref<1x128xf32, #tpu.memory_space<vmem>>, vector<1x128xf32>
    %4 = vector.broadcast %3 : vector<1x128xf32> to vector<128x128xf32>
    %5 = arith.addf %2, %4 : vector<128x128xf32>
    %cst_5 = arith.constant 0.000000e+00 : f32
    %6 = vector.broadcast %cst_5 : f32 to vector<128x128xf32>
    %7 = arith.maximumf %5, %6 : vector<128x128xf32>
    %c0_6 = arith.constant 0 : index
    %c0_7 = arith.constant 0 : index
    %8 = vector.load %arg4[%c0_6, %c0_7] : memref<128x128xf32, #tpu.memory_space<vmem>>, vector<128x128xf32>
    %cst_8 = arith.constant dense<0.000000e+00> : vector<128x128xf32>
    %9 = tpu.matmul %7, %8, %cst_8 {dimension_numbers = #tpu.dot_dimension_numbers<[1], [0], [0], [1], [0, 0, 1, 1], [], []>} : vector<128x128xf32>, vector<128x128xf32>, vector<128x128xf32> -> vector<128x128xf32>
    %c0_9 = arith.constant 0 : index
    %c0_10 = arith.constant 0 : index
    %10 = vector.load %arg5[%c0_9, %c0_10] : memref<1x128xf32, #tpu.memory_space<vmem>>, vector<1x128xf32>
    %11 = vector.broadcast %10 : vector<1x128xf32> to vector<128x128xf32>
    %12 = arith.addf %9, %11 : vector<128x128xf32>
    %13 = tpu.iota {dimensions = array<i32: 1>} : vector<128x128xi32>
    %c64_i32 = arith.constant 64 : i32
    %14 = vector.broadcast %c64_i32 : i32 to vector<128x128xi32>
    %15 = arith.cmpi slt, %13, %14 : vector<128x128xi32>
    %cst_11 = arith.constant 0.000000e+00 : f32
    %16 = vector.broadcast %cst_11 : f32 to vector<128x128xf32>
    %17 = arith.maximumf %12, %16 : vector<128x128xf32>
    %18 = math.absf %12 : vector<128x128xf32>
    %cst_12 = arith.constant 0.000000e+00 : f32
    %19 = vector.broadcast %cst_12 : f32 to vector<128x128xf32>
    %20 = arith.subf %19, %18 : vector<128x128xf32>
    %21 = math.exp %20 : vector<128x128xf32>
    %22 = math.log1p %21 : vector<128x128xf32>
    %23 = arith.addf %17, %22 : vector<128x128xf32>
    %24 = arith.select %15, %12, %23 : vector<128x128xi1>, vector<128x128xf32>
    %c0_13 = arith.constant 0 : index
    %c0_14 = arith.constant 0 : index
    %25 = vector.load %arg6[%c0_13, %c0_14] : memref<128x128xf32, #tpu.memory_space<vmem>>, vector<128x128xf32>
    tpu.vector_store %arg6[%c0_13, %c0_14], %24 {strides = array<i32>} : memref<128x128xf32, #tpu.memory_space<vmem>>, vector<128x128xf32>,
    return
  }
  func.func @transform_0(%arg0: i32) -> (i32, i32) {
    %c0_i32 = arith.constant 0 : i32
    %c0_i32_0 = arith.constant 0 : i32
    return %arg0, %c0_i32 : i32, i32
  }
  func.func @transform_1(%arg0: i32) -> (i32, i32) {
    %c0_i32 = arith.constant 0 : i32
    %c0_i32_0 = arith.constant 0 : i32
    %c0_i32_1 = arith.constant 0 : i32
    return %c0_i32, %c0_i32_0 : i32, i32
  }
  func.func @transform_2(%arg0: i32) -> (i32, i32) {
    %c0_i32 = arith.constant 0 : i32
    %c0_i32_0 = arith.constant 0 : i32
    %c0_i32_1 = arith.constant 0 : i32
    return %c0_i32, %c0_i32_0 : i32, i32
  }
  func.func @transform_3(%arg0: i32) -> (i32, i32) {
    %c0_i32 = arith.constant 0 : i32
    %c0_i32_0 = arith.constant 0 : i32
    %c0_i32_1 = arith.constant 0 : i32
    return %c0_i32, %c0_i32_0 : i32, i32
  }
  func.func @transform_4(%arg0: i32) -> (i32, i32) {
    %c0_i32 = arith.constant 0 : i32
    %c0_i32_0 = arith.constant 0 : i32
    %c0_i32_1 = arith.constant 0 : i32
    return %c0_i32, %c0_i32_0 : i32, i32
  }
  func.func @transform_5(%arg0: i32) -> (i32, i32) {
    %c0_i32 = arith.constant 0 : i32
    %c0_i32_0 = arith.constant 0 : i32
    return %arg0, %c0_i32 : i32, i32
  }
}

</mosaic_0001>

<llo_original>
// kernel: tpu_custom_call.1
$region0: #{tpu_custom_call.1}
  #allocation0 [shape = 'u32[]', space=smem, size = 0x4, offset = 0x4, fixed_abs, tag = 'smem constant byte address 0x4 - core index']
  #allocation1 [shape = 'u32[144,128]{1,0:T(1,128)}', space=vmem, size = 0x12000, scoped, tag = 'internal scratch']
  %s0 = inlined_call_operand.vmem [shape: f32[128,16], index: 0, kind: input, shape index: {}]
  %s1 = inlined_call_operand.vmem [shape: f32[16,128], index: 1, kind: input, shape index: {}]
  %s2 = inlined_call_operand.vmem [shape: f32[1,128], index: 2, kind: input, shape index: {}]
  %s3 = inlined_call_operand.vmem [shape: f32[128,128], index: 3, kind: input, shape index: {}]
  %s4 = inlined_call_operand.vmem [shape: f32[1,128], index: 4, kind: input, shape index: {}]
  %s5 = inlined_call_operand.hbm [shape: f32[128,128], index: 5, kind: output, shape index: {}]
  %s6 = sld [smem:[#allocation0]]
  $region30: #{tpu_custom_call.1} parent=0
    _
  %s8 = ssub.s32 1, %s6
  %s9 = scalar_select 0, %s8, %s6
  $region1: #{tpu_custom_call.1} parent=0
    #allocation2 [shape = 'u8[65536]{0}', space=vmem, size = 0x10000, scoped, tag = 'output window, operand 0, single buffered']
    #allocation3 [shape = 's32[1]{0}', space=sflag, size = 0x4, scoped, tag = 'scoped memory for tpu_custom_call.1']
    %10 = vsyncpa [#allocation3], 0
    // Predicated region
    $region2: #{tpu_custom_call.1} parent=1 // pred_check
      _
    $region3: #{tpu_custom_call.1} parent=1 // pred_check_branch
      %12 = sbr.rel (0) target = $region5
    $region4: #{tpu_custom_call.1} parent=1 // pred_region
      _
    $region5: #{tpu_custom_call.1} parent=1 // pred_fallthru
      _
    // Predicated region
    $region6: #{tpu_custom_call.1} parent=1 // pred_check
      _
    $region7: #{tpu_custom_call.1} parent=1 // pred_check_branch
      %14 = sbr.rel (0) target = $region9
    $region8: #{tpu_custom_call.1} parent=1 // pred_region
      _
    $region9: #{tpu_custom_call.1} parent=1 // pred_fallthru
      _
    // Predicated region
    $region10: #{tpu_custom_call.1} parent=1 // pred_check
      _
    $region11: #{tpu_custom_call.1} parent=1 // pred_check_branch
      %16 = sbr.rel (0) target = $region13
    $region12: #{tpu_custom_call.1} parent=1 // pred_region
      _
    $region13: #{tpu_custom_call.1} parent=1 // pred_fallthru
      _
    // Predicated region
    $region14: #{tpu_custom_call.1} parent=1 // pred_check
      _
    $region15: #{tpu_custom_call.1} parent=1 // pred_check_branch
      %18 = sbr.rel (0) target = $region17
    $region16: #{tpu_custom_call.1} parent=1 // pred_region
      _
    $region17: #{tpu_custom_call.1} parent=1 // pred_fallthru
      _
    // Predicated region
    $region18: #{tpu_custom_call.1} parent=1 // pred_check
      _
    $region19: #{tpu_custom_call.1} parent=1 // pred_check_branch
      %20 = sbr.rel (0) target = $region21
    $region20: #{tpu_custom_call.1} parent=1 // pred_region
      _
    $region21: #{tpu_custom_call.1} parent=1 // pred_fallthru
      _
    %v21 = vld [vmem:[%s0] sm:$0xff]
    %v22 = vld [vmem:[%s0 + $0x8] sm:$0xff]
    %v23 = vld [vmem:[%s0 + $0x10] sm:$0xff]
    %v24 = vld [vmem:[%s0 + $0x18] sm:$0xff]
    %v25 = vld [vmem:[%s0 + $0x20] sm:$0xff]
    %v26 = vld [vmem:[%s0 + $0x28] sm:$0xff]
    %v27 = vld [vmem:[%s0 + $0x30] sm:$0xff]
    %v28 = vld [vmem:[%s0 + $0x38] sm:$0xff]
    %v29 = vld [vmem:[%s0 + $0x40] sm:$0xff]
    %v30 = vld [vmem:[%s0 + $0x48] sm:$0xff]
    %v31 = vld [vmem:[%s0 + $0x50] sm:$0xff]
    %v32 = vld [vmem:[%s0 + $0x58] sm:$0xff]
    %v33 = vld [vmem:[%s0 + $0x60] sm:$0xff]
    %v34 = vld [vmem:[%s0 + $0x68] sm:$0xff]
    %v35 = vld [vmem:[%s0 + $0x70] sm:$0xff]
    %v36 = vld [vmem:[%s0 + $0x78] sm:$0xff]
    %v37 = vld [vmem:[%s1] sm:$0xff]
    %v38 = vld [vmem:[%s1 + $0x8] sm:$0xff]
    %v39 = vld [vmem:[%s2] sm:$0x1]
    %v41 = vlaneseq
    %v42 = vshrl.u32 %v41, 7
    %v43 = vsub.s32 0, %v42
    %v44 = vrot.slane %v39, %v43
    %vm46 = vcmask 130048
    %v48 = vsel %vm46, %v21, 0
    %v51 = vsel %vm46, %v22, 0
    %v54 = vsel %vm46, %v23, 0
    %v57 = vsel %vm46, %v24, 0
    %v60 = vsel %vm46, %v25, 0
    %v63 = vsel %vm46, %v26, 0
    %v66 = vsel %vm46, %v27, 0
    %v69 = vsel %vm46, %v28, 0
    %v72 = vsel %vm46, %v29, 0
    %v75 = vsel %vm46, %v30, 0
    %v78 = vsel %vm46, %v31, 0
    %v81 = vsel %vm46, %v32, 0
    %v84 = vsel %vm46, %v33, 0
    %v87 = vsel %vm46, %v34, 0
    %v90 = vsel %vm46, %v35, 0
    %v93 = vsel %vm46, %v36, 0
    %95 = vmatprep.subr.mxu0 0.0
    %96 = vmatpush1.msra.mxu0 0.0
    %97 = vmatprep.subr.mxu0 0.0
    %98 = vmatpush1.msra.mxu0 0.0
    %99 = vmatprep.subr.mxu0 0.0
    %100 = vmatpush1.msra.mxu0 0.0
    %101 = vmatprep.subr.mxu0 0.0
    %102 = vmatpush1.msra.mxu0 0.0
    %103 = vmatprep.subr.mxu0 0.0
    %104 = vmatpush1.msra.mxu0 0.0
    %105 = vmatprep.subr.mxu0 0.0
    %106 = vmatpush1.msra.mxu0 0.0
    %107 = vmatprep.subr.mxu0 0.0
    %108 = vmatpush1.msra.mxu0 0.0
    %109 = vmatprep.subr.mxu0 0.0
    %110 = vmatpush1.msra.mxu0 0.0
    %111 = vmatprep.subr.mxu0 0.0
    %112 = vmatpush1.msra.mxu0 0.0
    %113 = vmatprep.subr.mxu0 0.0
    %114 = vmatpush1.msra.mxu0 0.0
    %115 = vmatprep.subr.mxu0 0.0
    %116 = vmatpush1.msra.mxu0 0.0
    %117 = vmatprep.subr.mxu0 0.0
    %118 = vmatpush1.msra.mxu0 0.0
    %119 = vmatprep.subr.mxu0 0.0
    %120 = vmatpush1.msra.mxu0 0.0
    %121 = vmatprep.subr.mxu0 0.0
    %122 = vmatpush1.msra.mxu0 0.0
    %123 = vmatprep.subr.mxu0 0.0
    %124 = vmatpush1.msra.mxu0 %v38
    %125 = vmatprep.subr.mxu0 0.0
    %126 = vmatpush1.msra.mxu0 %v37
    %127 = vmatprep.subr.mxu0 0.0
    %128 = vmatpush2.msra.mxu0 0.0
    %129 = vmatprep.subr.mxu0 0.0
    %130 = vmatpush2.msra.mxu0 0.0
    %131 = vmatprep.subr.mxu0 0.0
    %132 = vmatpush2.msra.mxu0 0.0
    %133 = vmatprep.subr.mxu0 0.0
    %134 = vmatpush2.msra.mxu0 0.0
    %135 = vmatprep.subr.mxu0 0.0
    %136 = vmatpush2.msra.mxu0 0.0
    %137 = vmatprep.subr.mxu0 0.0
    %138 = vmatpush2.msra.mxu0 0.0
    %139 = vmatprep.subr.mxu0 0.0
    %140 = vmatpush2.msra.mxu0 0.0
    %141 = vmatprep.subr.mxu0 0.0
    %142 = vmatpush2.msra.mxu0 0.0
    %143 = vmatprep.subr.mxu0 0.0
    %144 = vmatpush2.msra.mxu0 0.0
    %145 = vmatprep.subr.mxu0 0.0
    %146 = vmatpush2.msra.mxu0 0.0
    %147 = vmatprep.subr.mxu0 0.0
    %148 = vmatpush2.msra.mxu0 0.0
    %149 = vmatprep.subr.mxu0 0.0
    %150 = vmatpush2.msra.mxu0 0.0
    %151 = vmatprep.subr.mxu0 0.0
    %152 = vmatpush2.msra.mxu0 0.0
    %153 = vmatprep.subr.mxu0 0.0
    %154 = vmatpush2.msra.mxu0 0.0
    %155 = vmatprep.subr.mxu0 0.0
    %156 = vmatpush2.msra.mxu0 0.0
    %157 = vmatprep.subr.mxu0 0.0
    %158 = vmatpush2.msra.mxu0 0.0
    %159 = vmatprep.mubr.f32.mxu0 0.0
    %160 = vmatmul.mubr.f32.gmra.mxu0 %v48
    %v161 = vpop.f32.mrf.mxu0
    %v162 = vadd.f32 %v44, %v161
    %v163 = vpop.f32.mrf.mxu0
    %164 = vmatprep.mubr.f32.mxu0 0.0
    %165 = vmatmul.mubr.f32.gmra.mxu0 %v51
    %v166 = vpop.f32.mrf.mxu0
    %v167 = vadd.f32 %v44, %v166
    %v168 = vpop.f32.mrf.mxu0
    %169 = vmatprep.mubr.f32.mxu0 0.0
    %170 = vmatmul.mubr.f32.gmra.mxu0 %v54
    %v171 = vpop.f32.mrf.mxu0
    %v172 = vadd.f32 %v44, %v171
    %v173 = vpop.f32.mrf.mxu0
    %174 = vmatprep.mubr.f32.mxu0 0.0
    %175 = vmatmul.mubr.f32.gmra.mxu0 %v57
    %v176 = vpop.f32.mrf.mxu0
    %v177 = vadd.f32 %v44, %v176
    %v178 = vpop.f32.mrf.mxu0
    %179 = vmatprep.mubr.f32.mxu0 0.0
    %180 = vmatmul.mubr.f32.gmra.mxu0 %v60
    %v181 = vpop.f32.mrf.mxu0
    %v182 = vadd.f32 %v44, %v181
    %v183 = vpop.f32.mrf.mxu0
    %184 = vmatprep.mubr.f32.mxu0 0.0
    %185 = vmatmul.mubr.f32.gmra.mxu0 %v63
    %v186 = vpop.f32.mrf.mxu0
    %v187 = vadd.f32 %v44, %v186
    %v188 = vpop.f32.mrf.mxu0
    %189 = vmatprep.mubr.f32.mxu0 0.0
    %190 = vmatmul.mubr.f32.gmra.mxu0 %v66
    %v191 = vpop.f32.mrf.mxu0
    %v192 = vadd.f32 %v44, %v191
    %v193 = vpop.f32.mrf.mxu0
    %194 = vmatprep.mubr.f32.mxu0 0.0
    %195 = vmatmul.mubr.f32.gmra.mxu0 %v69
    %v196 = vpop.f32.mrf.mxu0
    %v197 = vadd.f32 %v44, %v196
    %v198 = vpop.f32.mrf.mxu0
    %199 = vmatprep.mubr.f32.mxu0 0.0
    %200 = vmatmul.mubr.f32.gmra.mxu0 %v72
    %v201 = vpop.f32.mrf.mxu0
    %v202 = vadd.f32 %v44, %v201
    %v203 = vpop.f32.mrf.mxu0
    %204 = vmatprep.mubr.f32.mxu0 0.0
    %205 = vmatmul.mubr.f32.gmra.mxu0 %v75
    %v206 = vpop.f32.mrf.mxu0
    %v207 = vadd.f32 %v44, %v206
    %v208 = vpop.f32.mrf.mxu0
    %209 = vmatprep.mubr.f32.mxu0 0.0
    %210 = vmatmul.mubr.f32.gmra.mxu0 %v78
    %v211 = vpop.f32.mrf.mxu0
    %v212 = vadd.f32 %v44, %v211
    %v213 = vpop.f32.mrf.mxu0
    %214 = vmatprep.mubr.f32.mxu0 0.0
    %215 = vmatmul.mubr.f32.gmra.mxu0 %v81
    %v216 = vpop.f32.mrf.mxu0
    %v217 = vadd.f32 %v44, %v216
    %v218 = vpop.f32.mrf.mxu0
    %219 = vmatprep.mubr.f32.mxu0 0.0
    %220 = vmatmul.mubr.f32.gmra.mxu0 %v84
    %v221 = vpop.f32.mrf.mxu0
    %v222 = vadd.f32 %v44, %v221
    %v223 = vpop.f32.mrf.mxu0
    %224 = vmatprep.mubr.f32.mxu0 0.0
    %225 = vmatmul.mubr.f32.gmra.mxu0 %v87
    %v226 = vpop.f32.mrf.mxu0
    %v227 = vadd.f32 %v44, %v226
    %v228 = vpop.f32.mrf.mxu0
    %229 = vmatprep.mubr.f32.mxu0 0.0
    %230 = vmatmul.mubr.f32.gmra.mxu0 %v90
    %v231 = vpop.f32.mrf.mxu0
    %v232 = vadd.f32 %v44, %v231
    %v233 = vpop.f32.mrf.mxu0
    %234 = vmatprep.mubr.f32.mxu0 0.0
    %235 = vmatmul.mubr.f32.gmra.mxu0 %v93
    %v236 = vpop.f32.mrf.mxu0
    %v237 = vadd.f32 %v44, %v236
    %v238 = vpop.f32.mrf.mxu0
    %239 = vdwg.mxu0
    %v240 = vmax.f32 %v162, 0.0
    %v241 = vmax.f32 %v167, 0.0
    %v242 = vmax.f32 %v172, 0.0
    %v243 = vmax.f32 %v177, 0.0
    %v244 = vmax.f32 %v182, 0.0
    %v245 = vmax.f32 %v187, 0.0
    %v246 = vmax.f32 %v192, 0.0
    %v247 = vmax.f32 %v197, 0.0
    %v248 = vmax.f32 %v202, 0.0
    %v249 = vmax.f32 %v207, 0.0
    %v250 = vmax.f32 %v212, 0.0
    %v251 = vmax.f32 %v217, 0.0
    %v252 = vmax.f32 %v222, 0.0
    %v253 = vmax.f32 %v227, 0.0
    %v254 = vmax.f32 %v232, 0.0
    %v255 = vmax.f32 %v237, 0.0
    %v256 = vld [vmem:[%s3] sm:$0xff]
    %v257 = vld [vmem:[%s3 + $0x8] sm:$0xff]
    %v258 = vld [vmem:[%s3 + $0x10] sm:$0xff]
    %v259 = vld [vmem:[%s3 + $0x18] sm:$0xff]
    %v260 = vld [vmem:[%s3 + $0x20] sm:$0xff]
    %v261 = vld [vmem:[%s3 + $0x28] sm:$0xff]
    %v262 = vld [vmem:[%s3 + $0x30] sm:$0xff]
    %v263 = vld [vmem:[%s3 + $0x38] sm:$0xff]
    %v264 = vld [vmem:[%s3 + $0x40] sm:$0xff]
    %v265 = vld [vmem:[%s3 + $0x48] sm:$0xff]
    %v266 = vld [vmem:[%s3 + $0x50] sm:$0xff]
    %v267 = vld [vmem:[%s3 + $0x58] sm:$0xff]
    %v268 = vld [vmem:[%s3 + $0x60] sm:$0xff]
    %v269 = vld [vmem:[%s3 + $0x68] sm:$0xff]
    %v270 = vld [vmem:[%s3 + $0x70] sm:$0xff]
    %v271 = vld [vmem:[%s3 + $0x78] sm:$0xff]
    %v272 = vld [vmem:[%s4] sm:$0x1]
    %v274 = vlaneseq
    %v275 = vshrl.u32 %v274, 7
    %v276 = vsub.s32 0, %v275
    %v277 = vrot.slane %v272, %v276
    %279 = vmatprep.subr.mxu0 0.0
    %280 = vmatpush1.msra.mxu0 %v271
    %281 = vmatprep.subr.mxu0 0.0
    %282 = vmatpush1.msra.mxu0 %v270
    %283 = vmatprep.subr.mxu0 0.0
    %284 = vmatpush1.msra.mxu0 %v269
    %285 = vmatprep.subr.mxu0 0.0
    %286 = vmatpush1.msra.mxu0 %v268
    %287 = vmatprep.subr.mxu0 0.0
    %288 = vmatpush1.msra.mxu0 %v267
    %289 = vmatprep.subr.mxu0 0.0
    %290 = vmatpush1.msra.mxu0 %v266
    %291 = vmatprep.subr.mxu0 0.0
    %292 = vmatpush1.msra.mxu0 %v265
    %293 = vmatprep.subr.mxu0 0.0
    %294 = vmatpush1.msra.mxu0 %v264
    %295 = vmatprep.subr.mxu0 0.0
    %296 = vmatpush1.msra.mxu0 %v263
    %297 = vmatprep.subr.mxu0 0.0
    %298 = vmatpush1.msra.mxu0 %v262
    %299 = vmatprep.subr.mxu0 0.0
    %300 = vmatpush1.msra.mxu0 %v261
    %301 = vmatprep.subr.mxu0 0.0
    %302 = vmatpush1.msra.mxu0 %v260
    %303 = vmatprep.subr.mxu0 0.0
    %304 = vmatpush1.msra.mxu0 %v259
    %305 = vmatprep.subr.mxu0 0.0
    %306 = vmatpush1.msra.mxu0 %v258
    %307 = vmatprep.subr.mxu0 0.0
    %308 = vmatpush1.msra.mxu0 %v257
    %309 = vmatprep.subr.mxu0 0.0
    %310 = vmatpush1.msra.mxu0 %v256
    %311 = vmatprep.subr.mxu0 0.0
    %312 = vmatpush2.msra.mxu0 0.0
    %313 = vmatprep.subr.mxu0 0.0
    %314 = vmatpush2.msra.mxu0 0.0
    %315 = vmatprep.subr.mxu0 0.0
    %316 = vmatpush2.msra.mxu0 0.0
    %317 = vmatprep.subr.mxu0 0.0
    %318 = vmatpush2.msra.mxu0 0.0
    %319 = vmatprep.subr.mxu0 0.0
    %320 = vmatpush2.msra.mxu0 0.0
    %321 = vmatprep.subr.mxu0 0.0
    %322 = vmatpush2.msra.mxu0 0.0
    %323 = vmatprep.subr.mxu0 0.0
    %324 = vmatpush2.msra.mxu0 0.0
    %325 = vmatprep.subr.mxu0 0.0
    %326 = vmatpush2.msra.mxu0 0.0
    %327 = vmatprep.subr.mxu0 0.0
    %328 = vmatpush2.msra.mxu0 0.0
    %329 = vmatprep.subr.mxu0 0.0
    %330 = vmatpush2.msra.mxu0 0.0
    %331 = vmatprep.subr.mxu0 0.0
    %332 = vmatpush2.msra.mxu0 0.0
    %333 = vmatprep.subr.mxu0 0.0
    %334 = vmatpush2.msra.mxu0 0.0
    %335 = vmatprep.subr.mxu0 0.0
    %336 = vmatpush2.msra.mxu0 0.0
    %337 = vmatprep.subr.mxu0 0.0
    %338 = vmatpush2.msra.mxu0 0.0
    %339 = vmatprep.subr.mxu0 0.0
    %340 = vmatpush2.msra.mxu0 0.0
    %341 = vmatprep.subr.mxu0 0.0
    %342 = vmatpush2.msra.mxu0 0.0
    %343 = vmatprep.mubr.f32.mxu0 0.0
    %344 = vmatmul.mubr.f32.gmra.mxu0 %v240
    %v345 = vpop.f32.mrf.mxu0
    %v346 = vadd.f32 %v277, %v345
    %v347 = vpop.f32.mrf.mxu0
    %348 = vmatprep.mubr.f32.mxu0 0.0
    %349 = vmatmul.mubr.f32.gmra.mxu0 %v241
    %v350 = vpop.f32.mrf.mxu0
    %v351 = vadd.f32 %v277, %v350
    %v352 = vpop.f32.mrf.mxu0
    %353 = vmatprep.mubr.f32.mxu0 0.0
    %354 = vmatmul.mubr.f32.gmra.mxu0 %v242
    %v355 = vpop.f32.mrf.mxu0
    %v356 = vadd.f32 %v277, %v355
    %v357 = vpop.f32.mrf.mxu0
    %358 = vmatprep.mubr.f32.mxu0 0.0
    %359 = vmatmul.mubr.f32.gmra.mxu0 %v243
    %v360 = vpop.f32.mrf.mxu0
    %v361 = vadd.f32 %v277, %v360
    %v362 = vpop.f32.mrf.mxu0
    %363 = vmatprep.mubr.f32.mxu0 0.0
    %364 = vmatmul.mubr.f32.gmra.mxu0 %v244
    %v365 = vpop.f32.mrf.mxu0
    %v366 = vadd.f32 %v277, %v365
    %v367 = vpop.f32.mrf.mxu0
    %368 = vmatprep.mubr.f32.mxu0 0.0
    %369 = vmatmul.mubr.f32.gmra.mxu0 %v245
    %v370 = vpop.f32.mrf.mxu0
    %v371 = vadd.f32 %v277, %v370
    %v372 = vpop.f32.mrf.mxu0
    %373 = vmatprep.mubr.f32.mxu0 0.0
    %374 = vmatmul.mubr.f32.gmra.mxu0 %v246
    %v375 = vpop.f32.mrf.mxu0
    %v376 = vadd.f32 %v277, %v375
    %v377 = vpop.f32.mrf.mxu0
    %378 = vmatprep.mubr.f32.mxu0 0.0
    %379 = vmatmul.mubr.f32.gmra.mxu0 %v247
    %v380 = vpop.f32.mrf.mxu0
    %v381 = vadd.f32 %v277, %v380
    %v382 = vpop.f32.mrf.mxu0
    %383 = vmatprep.mubr.f32.mxu0 0.0
    %384 = vmatmul.mubr.f32.gmra.mxu0 %v248
    %v385 = vpop.f32.mrf.mxu0
    %v386 = vadd.f32 %v277, %v385
    %v387 = vpop.f32.mrf.mxu0
    %388 = vmatprep.mubr.f32.mxu0 0.0
    %389 = vmatmul.mubr.f32.gmra.mxu0 %v249
    %v390 = vpop.f32.mrf.mxu0
    %v391 = vadd.f32 %v277, %v390
    %v392 = vpop.f32.mrf.mxu0
    %393 = vmatprep.mubr.f32.mxu0 0.0
    %394 = vmatmul.mubr.f32.gmra.mxu0 %v250
    %v395 = vpop.f32.mrf.mxu0
    %v396 = vadd.f32 %v277, %v395
    %v397 = vpop.f32.mrf.mxu0
    %398 = vmatprep.mubr.f32.mxu0 0.0
    %399 = vmatmul.mubr.f32.gmra.mxu0 %v251
    %v400 = vpop.f32.mrf.mxu0
    %v401 = vadd.f32 %v277, %v400
    %v402 = vpop.f32.mrf.mxu0
    %403 = vmatprep.mubr.f32.mxu0 0.0
    %404 = vmatmul.mubr.f32.gmra.mxu0 %v252
    %v405 = vpop.f32.mrf.mxu0
    %v406 = vadd.f32 %v277, %v405
    %v407 = vpop.f32.mrf.mxu0
    %408 = vmatprep.mubr.f32.mxu0 0.0
    %409 = vmatmul.mubr.f32.gmra.mxu0 %v253
    %v410 = vpop.f32.mrf.mxu0
    %v411 = vadd.f32 %v277, %v410
    %v412 = vpop.f32.mrf.mxu0
    %413 = vmatprep.mubr.f32.mxu0 0.0
    %414 = vmatmul.mubr.f32.gmra.mxu0 %v254
    %v415 = vpop.f32.mrf.mxu0
    %v416 = vadd.f32 %v277, %v415
    %v417 = vpop.f32.mrf.mxu0
    %418 = vmatprep.mubr.f32.mxu0 0.0
    %419 = vmatmul.mubr.f32.gmra.mxu0 %v255
    %v420 = vpop.f32.mrf.mxu0
    %v421 = vadd.f32 %v277, %v420
    %v422 = vpop.f32.mrf.mxu0
    %423 = vdwg.mxu0
    %v424 = vlaneseq
    %v425 = vand.u32 %v424, 127
    %vm426 = vcmp.lt.s32.totalorder %v425, 64
    %v427 = vmax.f32 %v346, 0.0
    %v428 = vmax.f32 %v351, 0.0
    %v429 = vmax.f32 %v356, 0.0
    %v430 = vmax.f32 %v361, 0.0
    %v431 = vmax.f32 %v366, 0.0
    %v432 = vmax.f32 %v371, 0.0
    %v433 = vmax.f32 %v376, 0.0
    %v434 = vmax.f32 %v381, 0.0
    %v435 = vmax.f32 %v386, 0.0
    %v436 = vmax.f32 %v391, 0.0
    %v437 = vmax.f32 %v396, 0.0
    %v438 = vmax.f32 %v401, 0.0
    %v439 = vmax.f32 %v406, 0.0
    %v440 = vmax.f32 %v411, 0.0
    %v441 = vmax.f32 %v416, 0.0
    %v442 = vmax.f32 %v421, 0.0
    %v443 = vand.u32 2147483647, %v346
    %v444 = vand.u32 2147483647, %v351
    %v445 = vand.u32 2147483647, %v356
    %v446 = vand.u32 2147483647, %v361
    %v447 = vand.u32 2147483647, %v366
    %v448 = vand.u32 2147483647, %v371
    %v449 = vand.u32 2147483647, %v376
    %v450 = vand.u32 2147483647, %v381
    %v451 = vand.u32 2147483647, %v386
    %v452 = vand.u32 2147483647, %v391
    %v453 = vand.u32 2147483647, %v396
    %v454 = vand.u32 2147483647, %v401
    %v455 = vand.u32 2147483647, %v406
    %v456 = vand.u32 2147483647, %v411
    %v457 = vand.u32 2147483647, %v416
    %v458 = vand.u32 2147483647, %v421
    %v459 = vsub.f32 0.0, %v443
    %v460 = vsub.f32 0.0, %v444
    %v461 = vsub.f32 0.0, %v445
    %v462 = vsub.f32 0.0, %v446
    %v463 = vsub.f32 0.0, %v447
    %v464 = vsub.f32 0.0, %v448
    %v465 = vsub.f32 0.0, %v449
    %v466 = vsub.f32 0.0, %v450
    %v467 = vsub.f32 0.0, %v451
    %v468 = vsub.f32 0.0, %v452
    %v469 = vsub.f32 0.0, %v453
    %v470 = vsub.f32 0.0, %v454
    %v471 = vsub.f32 0.0, %v455
    %v472 = vsub.f32 0.0, %v456
    %v473 = vsub.f32 0.0, %v457
    %v474 = vsub.f32 0.0, %v458
    %v475 = vmul.f32 %v459, 1.442695
    %v476 = vpow.pop %v475
    %v477 = vmul.f32 %v460, 1.442695
    %v478 = vpow.pop %v477
    %v479 = vmul.f32 %v461, 1.442695
    %v480 = vpow.pop %v479
    %v481 = vmul.f32 %v462, 1.442695
    %v482 = vpow.pop %v481
    %v483 = vmul.f32 %v463, 1.442695
    %v484 = vpow.pop %v483
    %v485 = vmul.f32 %v464, 1.442695
    %v486 = vpow.pop %v485
    %v487 = vmul.f32 %v465, 1.442695
    %v488 = vpow.pop %v487
    %v489 = vmul.f32 %v466, 1.442695
    %v490 = vpow.pop %v489
    %v491 = vmul.f32 %v467, 1.442695
    %v492 = vpow.pop %v491
    %v493 = vmul.f32 %v468, 1.442695
    %v494 = vpow.pop %v493
    %v495 = vmul.f32 %v469, 1.442695
    %v496 = vpow.pop %v495
    %v497 = vmul.f32 %v470, 1.442695
    %v498 = vpow.pop %v497
    %v499 = vmul.f32 %v471, 1.442695
    %v500 = vpow.pop %v499
    %v501 = vmul.f32 %v472, 1.442695
    %v502 = vpow.pop %v501
    %v503 = vmul.f32 %v473, 1.442695
    %v504 = vpow.pop %v503
    %v505 = vmul.f32 %v474, 1.442695
    %v506 = vpow.pop %v505
    %v507 = vadd.f32 %v476, 1.0
    %v508 = vlog2.pop %v507
    %v509 = vmul.f32 %v508, 0.6931472
    %v510 = vmul.f32 -0.5, %v476
    %v511 = vadd.f32 %v510, 1.0
    %v512 = vmul.f32 %v511, %v476
    %v513 = vand.u32 2147483647, %v476
    %vm514 = vcmp.lt.f32.partialorder %v513, 0.0004427343
    %v515 = vsel %vm514, %v512, %v509
    %v516 = vadd.f32 %v478, 1.0
    %v517 = vlog2.pop %v516
    %v518 = vmul.f32 %v517, 0.6931472
    %v519 = vmul.f32 -0.5, %v478
    %v520 = vadd.f32 %v519, 1.0
    %v521 = vmul.f32 %v520, %v478
    %v522 = vand.u32 2147483647, %v478
    %vm523 = vcmp.lt.f32.partialorder %v522, 0.0004427343
    %v524 = vsel %vm523, %v521, %v518
    %v525 = vadd.f32 %v480, 1.0
    %v526 = vlog2.pop %v525
    %v527 = vmul.f32 %v526, 0.6931472
    %v528 = vmul.f32 -0.5, %v480
    %v529 = vadd.f32 %v528, 1.0
    %v530 = vmul.f32 %v529, %v480
    %v531 = vand.u32 2147483647, %v480
    %vm532 = vcmp.lt.f32.partialorder %v531, 0.0004427343
    %v533 = vsel %vm532, %v530, %v527
    %v534 = vadd.f32 %v482, 1.0
    %v535 = vlog2.pop %v534
    %v536 = vmul.f32 %v535, 0.6931472
    %v537 = vmul.f32 -0.5, %v482
    %v538 = vadd.f32 %v537, 1.0
    %v539 = vmul.f32 %v538, %v482
    %v540 = vand.u32 2147483647, %v482
    %vm541 = vcmp.lt.f32.partialorder %v540, 0.0004427343
    %v542 = vsel %vm541, %v539, %v536
    %v543 = vadd.f32 %v484, 1.0
    %v544 = vlog2.pop %v543
    %v545 = vmul.f32 %v544, 0.6931472
    %v546 = vmul.f32 -0.5, %v484
    %v547 = vadd.f32 %v546, 1.0
    %v548 = vmul.f32 %v547, %v484
    %v549 = vand.u32 2147483647, %v484
    %vm550 = vcmp.lt.f32.partialorder %v549, 0.0004427343
    %v551 = vsel %vm550, %v548, %v545
    %v552 = vadd.f32 %v486, 1.0
    %v553 = vlog2.pop %v552
    %v554 = vmul.f32 %v553, 0.6931472
    %v555 = vmul.f32 -0.5, %v486
    %v556 = vadd.f32 %v555, 1.0
    %v557 = vmul.f32 %v556, %v486
    %v558 = vand.u32 2147483647, %v486
    %vm559 = vcmp.lt.f32.partialorder %v558, 0.0004427343
    %v560 = vsel %vm559, %v557, %v554
    %v561 = vadd.f32 %v488, 1.0
    %v562 = vlog2.pop %v561
    %v563 = vmul.f32 %v562, 0.6931472
    %v564 = vmul.f32 -0.5, %v488
    %v565 = vadd.f32 %v564, 1.0
    %v566 = vmul.f32 %v565, %v488
    %v567 = vand.u32 2147483647, %v488
    %vm568 = vcmp.lt.f32.partialorder %v567, 0.0004427343
    %v569 = vsel %vm568, %v566, %v563
    %v570 = vadd.f32 %v490, 1.0
    %v571 = vlog2.pop %v570
    %v572 = vmul.f32 %v571, 0.6931472
    %v573 = vmul.f32 -0.5, %v490
    %v574 = vadd.f32 %v573, 1.0
    %v575 = vmul.f32 %v574, %v490
    %v576 = vand.u32 2147483647, %v490
    %vm577 = vcmp.lt.f32.partialorder %v576, 0.0004427343
    %v578 = vsel %vm577, %v575, %v572
    %v579 = vadd.f32 %v492, 1.0
    %v580 = vlog2.pop %v579
    %v581 = vmul.f32 %v580, 0.6931472
    %v582 = vmul.f32 -0.5, %v492
    %v583 = vadd.f32 %v582, 1.0
    %v584 = vmul.f32 %v583, %v492
    %v585 = vand.u32 2147483647, %v492
    %vm586 = vcmp.lt.f32.partialorder %v585, 0.0004427343
    %v587 = vsel %vm586, %v584, %v581
    %v588 = vadd.f32 %v494, 1.0
    %v589 = vlog2.pop %v588
    %v590 = vmul.f32 %v589, 0.6931472
    %v591 = vmul.f32 -0.5, %v494
    %v592 = vadd.f32 %v591, 1.0
    %v593 = vmul.f32 %v592, %v494
    %v594 = vand.u32 2147483647, %v494
    %vm595 = vcmp.lt.f32.partialorder %v594, 0.0004427343
    %v596 = vsel %vm595, %v593, %v590
    %v597 = vadd.f32 %v496, 1.0
    %v598 = vlog2.pop %v597
    %v599 = vmul.f32 %v598, 0.6931472
    %v600 = vmul.f32 -0.5, %v496
    %v601 = vadd.f32 %v600, 1.0
    %v602 = vmul.f32 %v601, %v496
    %v603 = vand.u32 2147483647, %v496
    %vm604 = vcmp.lt.f32.partialorder %v603, 0.0004427343
    %v605 = vsel %vm604, %v602, %v599
    %v606 = vadd.f32 %v498, 1.0
    %v607 = vlog2.pop %v606
    %v608 = vmul.f32 %v607, 0.6931472
    %v609 = vmul.f32 -0.5, %v498
    %v610 = vadd.f32 %v609, 1.0
    %v611 = vmul.f32 %v610, %v498
    %v612 = vand.u32 2147483647, %v498
    %vm613 = vcmp.lt.f32.partialorder %v612, 0.0004427343
    %v614 = vsel %vm613, %v611, %v608
    %v615 = vadd.f32 %v500, 1.0
    %v616 = vlog2.pop %v615
    %v617 = vmul.f32 %v616, 0.6931472
    %v618 = vmul.f32 -0.5, %v500
    %v619 = vadd.f32 %v618, 1.0
    %v620 = vmul.f32 %v619, %v500
    %v621 = vand.u32 2147483647, %v500
    %vm622 = vcmp.lt.f32.partialorder %v621, 0.0004427343
    %v623 = vsel %vm622, %v620, %v617
    %v624 = vadd.f32 %v502, 1.0
    %v625 = vlog2.pop %v624
    %v626 = vmul.f32 %v625, 0.6931472
    %v627 = vmul.f32 -0.5, %v502
    %v628 = vadd.f32 %v627, 1.0
    %v629 = vmul.f32 %v628, %v502
    %v630 = vand.u32 2147483647, %v502
    %vm631 = vcmp.lt.f32.partialorder %v630, 0.0004427343
    %v632 = vsel %vm631, %v629, %v626
    %v633 = vadd.f32 %v504, 1.0
    %v634 = vlog2.pop %v633
    %v635 = vmul.f32 %v634, 0.6931472
    %v636 = vmul.f32 -0.5, %v504
    %v637 = vadd.f32 %v636, 1.0
    %v638 = vmul.f32 %v637, %v504
    %v639 = vand.u32 2147483647, %v504
    %vm640 = vcmp.lt.f32.partialorder %v639, 0.0004427343
    %v641 = vsel %vm640, %v638, %v635
    %v642 = vadd.f32 %v506, 1.0
    %v643 = vlog2.pop %v642
    %v644 = vmul.f32 %v643, 0.6931472
    %v645 = vmul.f32 -0.5, %v506
    %v646 = vadd.f32 %v645, 1.0
    %v647 = vmul.f32 %v646, %v506
    %v648 = vand.u32 2147483647, %v506
    %vm649 = vcmp.lt.f32.partialorder %v648, 0.0004427343
    %v650 = vsel %vm649, %v647, %v644
    %v651 = vadd.f32 %v427, %v515
    %v652 = vadd.f32 %v428, %v524
    %v653 = vadd.f32 %v429, %v533
    %v654 = vadd.f32 %v430, %v542
    %v655 = vadd.f32 %v431, %v551
    %v656 = vadd.f32 %v432, %v560
    %v657 = vadd.f32 %v433, %v569
    %v658 = vadd.f32 %v434, %v578
    %v659 = vadd.f32 %v435, %v587
    %v660 = vadd.f32 %v436, %v596
    %v661 = vadd.f32 %v437, %v605
    %v662 = vadd.f32 %v438, %v614
    %v663 = vadd.f32 %v439, %v623
    %v664 = vadd.f32 %v440, %v632
    %v665 = vadd.f32 %v441, %v641
    %v666 = vadd.f32 %v442, %v650
    %v667 = vsel %vm426, %v346, %v651
    %v668 = vsel %vm426, %v351, %v652
    %v669 = vsel %vm426, %v356, %v653
    %v670 = vsel %vm426, %v361, %v654
    %v671 = vsel %vm426, %v366, %v655
    %v672 = vsel %vm426, %v371, %v656
    %v673 = vsel %vm426, %v376, %v657
    %v674 = vsel %vm426, %v381, %v658
    %v675 = vsel %vm426, %v386, %v659
    %v676 = vsel %vm426, %v391, %v660
    %v677 = vsel %vm426, %v396, %v661
    %v678 = vsel %vm426, %v401, %v662
    %v679 = vsel %vm426, %v406, %v663
    %v680 = vsel %vm426, %v411, %v664
    %v681 = vsel %vm426, %v416, %v665
    %v682 = vsel %vm426, %v421, %v666
    %683 = vst [vmem:[#allocation2] sm:$0xff] %v667
    %684 = vst [vmem:[#allocation2 + $0x8] sm:$0xff] %v668
    %685 = vst [vmem:[#allocation2 + $0x10] sm:$0xff] %v669
    %686 = vst [vmem:[#allocation2 + $0x18] sm:$0xff] %v670
    %687 = vst [vmem:[#allocation2 + $0x20] sm:$0xff] %v671
    %688 = vst [vmem:[#allocation2 + $0x28] sm:$0xff] %v672
    %689 = vst [vmem:[#allocation2 + $0x30] sm:$0xff] %v673
    %690 = vst [vmem:[#allocation2 + $0x38] sm:$0xff] %v674
    %691 = vst [vmem:[#allocation2 + $0x40] sm:$0xff] %v675
    %692 = vst [vmem:[#allocation2 + $0x48] sm:$0xff] %v676
    %693 = vst [vmem:[#allocation2 + $0x50] sm:$0xff] %v677
    %694 = vst [vmem:[#allocation2 + $0x58] sm:$0xff] %v678
    %695 = vst [vmem:[#allocation2 + $0x60] sm:$0xff] %v679
    %696 = vst [vmem:[#allocation2 + $0x68] sm:$0xff] %v680
    %697 = vst [vmem:[#allocation2 + $0x70] sm:$0xff] %v681
    %698 = vst [vmem:[#allocation2 + $0x78] sm:$0xff] %v682
    // Predicated region
    $region22: #{tpu_custom_call.1} parent=1 // pred_check
      _
    $region23: #{tpu_custom_call.1} parent=1 // pred_check_branch
      %700 = sbr.rel (0) target = $region25
    $region24: #{tpu_custom_call.1} parent=1 // pred_region
      %s702 = ssub.s32 2048, 2048
      %703 = vsyncadd [#allocation3], %s702
      %s704 = sshll.u32 [#allocation2], 4
      %s705 = int_to_ptr.vmem [resolvable:$true] %s704
      %710 = dma.vmem_to_hbm [thread:$0]  %s705, 2048, %s5, [#allocation3], 128, 128, 8
    $region25: #{tpu_custom_call.1} parent=1 // pred_fallthru
      _
    // Predicated region
    $region26: #{tpu_custom_call.1} parent=1 // pred_check
      _
    $region27: #{tpu_custom_call.1} parent=1 // pred_check_branch
      %712 = sbr.rel (0) target = $region29
    $region28: #{tpu_custom_call.1} parent=1 // pred_region
      %713 = dma.done [#allocation3], 2048
    $region29: #{tpu_custom_call.1} parent=1 // pred_fallthru
      _
    %714 = vsyncpa [#allocation3], 1

</llo_original>
